<compile_context>
chip_gen: v5e
topology: v5e:2x2
jax: 0.10.0
libtpu: 0.0.40
codegen_flags: <defaults>
</compile_context>

<pallas_src>
import jax
import jax.numpy as jnp
from jax.experimental import pallas as pl
from jax.experimental.pallas import tpu as pltpu

LN_EPS = 1e-5   # PyTorch nn.LayerNorm default
LANE = 128      # TPU lane width


def _round_up(x, m):
    return ((x + m - 1) // m) * m


def _layernorm(h, gamma, beta):
    mean = jnp.mean(h, axis=-1, keepdims=True)
    var = jnp.mean((h - mean) ** 2, axis=-1, keepdims=True)
    return (h - mean) * jax.lax.rsqrt(var + LN_EPS) * gamma + beta


def actor_kernel(obs_ref, goal_ref, std_in_ref,
                 w1o_ref, w1g_ref, b1_ref, g1_ref, be1_ref,
                 w2_ref, b2_ref, g2_ref, be2_ref,
                 w3_ref, b3_ref,
                 w4_ref, b4_ref,
                 mu_ref, std_ref):
    # Layer 1: split-weight matmul fuses the obs/goal concat into the kernel.
    obs = obs_ref[...].astype(jnp.bfloat16)
    goal = goal_ref[...].astype(jnp.bfloat16)
    h = (jnp.dot(obs, w1o_ref[...], preferred_element_type=jnp.float32)
         + jnp.dot(goal, w1g_ref[...], preferred_element_type=jnp.float32)
         + b1_ref[...])
    h = jnp.tanh(_layernorm(h, g1_ref[...], be1_ref[...]))

    # Layer 2: Linear + LayerNorm + Tanh (LN/tanh in f32, dot operands bf16).
    h = jnp.dot(h.astype(jnp.bfloat16), w2_ref[...],
                preferred_element_type=jnp.float32) + b2_ref[...]
    h = jnp.tanh(_layernorm(h, g2_ref[...], be2_ref[...]))

    # Layer 3: Linear + ReLU.
    h = jnp.dot(h.astype(jnp.bfloat16), w3_ref[...],
                preferred_element_type=jnp.float32) + b3_ref[...]
    h = jnp.maximum(h, 0.0)

    # Action head (lane-padded to 128) + final tanh. Padded columns of W4/b4 are
    # zero, so padded lanes hold tanh(0)=0 and are sliced off in the wrapper.
    mu = jnp.dot(h.astype(jnp.bfloat16), w4_ref[...],
                 preferred_element_type=jnp.float32) + b4_ref[...]
    mu_ref[...] = jnp.tanh(mu)

    # std fused as a second lane-dense output (scalar comes from SMEM).
    std_ref[...] = jnp.ones_like(std_ref) * std_in_ref[0]


def actor_forward(obs, goal, std, params, *, batch_tile=256):
    """Returns (mu, std) of the TruncatedNormal policy distribution."""
    obs = jnp.asarray(obs, jnp.float32)
    goal = jnp.asarray(goal, jnp.float32)
    B, obs_dim = obs.shape
    goal_dim = goal.shape[1]
    H = params["w2"].shape[0]
    A_pad = params["w4"].shape[1]
    action_dim = params["action_dim"]

    # Batch tiling: TB multiple of 8, capped at `batch_tile` (sized well within
    # v7x's 64 MiB VMEM / 32 MiB default scoped limit at these widths).
    TB = min(batch_tile, _round_up(B, 8))
    B_pad = _round_up(B, TB)
    if B_pad != B:
        obs = jnp.pad(obs, ((0, B_pad - B), (0, 0)))
        goal = jnp.pad(goal, ((0, B_pad - B), (0, 0)))

    std_scalar = jnp.asarray([std], dtype=jnp.float32)

    weights = (
        params["w1o"], params["w1g"], params["b1"], params["g1"], params["be1"],
        params["w2"], params["b2"], params["g2"], params["be2"],
        params["w3"], params["b3"],
        params["w4"], params["b4"],
    )

    batch_map = lambda i: (i, 0)
    const_map = lambda i: (0, 0)          # weights stay VMEM-resident across steps
    weight_specs = [pl.BlockSpec(tuple(w.shape), const_map) for w in weights]

    in_specs = (
        [pl.BlockSpec((TB, obs_dim), batch_map),
         pl.BlockSpec((TB, goal_dim), batch_map),
         pl.BlockSpec(memory_space=pltpu.MemorySpace.SMEM)]
        + weight_specs
    )
    out_specs = [pl.BlockSpec((TB, A_pad), batch_map),
                 pl.BlockSpec((TB, A_pad), batch_map)]
    out_shape = [jax.ShapeDtypeStruct((B_pad, A_pad), jnp.float32),
                 jax.ShapeDtypeStruct((B_pad, A_pad), jnp.float32)]

    flops = 2 * B_pad * (obs_dim * H + goal_dim * H + 2 * H * H + H * A_pad)
    transcendentals = B_pad * (2 * H + A_pad + 2)
    bytes_accessed = (int(obs.nbytes) + int(goal.nbytes) + int(std_scalar.nbytes)
                      + sum(int(w.nbytes) for w in weights)
                      + 2 * B_pad * A_pad * 4)

    mu_pad, std_pad = pl.pallas_call(
        actor_kernel,
        grid=(B_pad // TB,),
        in_specs=in_specs,
        out_specs=out_specs,
        out_shape=out_shape,
        compiler_params=pltpu.CompilerParams(
            dimension_semantics=("parallel",)),
        cost_estimate=pl.CostEstimate(
            flops=flops,
            transcendentals=transcendentals,
            bytes_accessed=bytes_accessed),
    )(obs, goal, std_scalar, *weights)

    mu = mu_pad[:B, :action_dim]
    std_out = std_pad[:B, :action_dim]
    # TODO(synk): TruncatedNormal sampling is stochastic host-side logic; we
    # return its (mu, std) parameters, which fully define the distribution.
    return mu, std_out


def init_params(key, obs_dim, goal_dim, hidden_dim, action_dim):
    """Deterministic synthetic init (stand-in for utils.weight_init).

    Weights are stored bf16 (MXU operand dtype), biases / LN params in f32.
    W1 is pre-split into obs/goal halves; the action head is zero-padded to a
    lane-dense 128-wide output.
    """
    in_dim = obs_dim + goal_dim
    ks = jax.random.split(key, 4)

    def linear(k, din, dout):
        scale = 1.0 / jnp.sqrt(jnp.float32(din))
        w = jax.random.normal(k, (din, dout), jnp.float32) * scale
        b = jnp.zeros((1, dout), jnp.float32)
        return w, b

    w1, b1 = linear(ks[0], in_dim, hidden_dim)
    w2, b2 = linear(ks[1], hidden_dim, hidden_dim)
    w3, b3 = linear(ks[2], hidden_dim, hidden_dim)
    w4, b4 = linear(ks[3], hidden_dim, action_dim)

    a_pad = _round_up(action_dim, LANE)
    w4p = jnp.zeros((hidden_dim, a_pad), jnp.float32).at[:, :action_dim].set(w4)
    b4p = jnp.zeros((1, a_pad), jnp.float32).at[:, :action_dim].set(b4)

    bf16 = lambda w: w.astype(jnp.bfloat16)

    return {
        "action_dim": action_dim,
        "w1o": bf16(w1[:obs_dim]), "w1g": bf16(w1[obs_dim:]),
        "b1": b1,
        "g1": jnp.ones((1, hidden_dim), jnp.float32),
        "be1": jnp.zeros((1, hidden_dim), jnp.float32),
        "w2": bf16(w2), "b2": b2,
        "g2": jnp.ones((1, hidden_dim), jnp.float32),
        "be2": jnp.zeros((1, hidden_dim), jnp.float32),
        "w3": bf16(w3), "b3": b3,
        "w4": bf16(w4p), "b4": b4p,
    }


if __name__ == "__main__":
    obs_dim, goal_dim, action_dim, hidden_dim = 16, 16, 8, 32
    batch = 8

    key = jax.random.PRNGKey(0)
    k_obs, k_goal, k_params = jax.random.split(key, 3)

    obs = jax.random.normal(k_obs, (batch, obs_dim), jnp.float32)
    goal = jax.random.normal(k_goal, (batch, goal_dim), jnp.float32)
    horizon = jnp.zeros((batch,), jnp.int32)  # unused by the reference forward
    std = 0.2

    params = init_params(k_params, obs_dim, goal_dim, hidden_dim, action_dim)

    mu, std_arr = actor_forward(obs, goal, std, params)
    jax.block_until_ready(mu)
    jax.block_until_ready(std_arr)

    assert mu.shape == (batch, action_dim)
    assert std_arr.shape == (batch, action_dim)
    assert bool(jnp.all(jnp.abs(mu) <= 1.0))
    assert bool(jnp.allclose(std_arr, std))

    print("KERNEL_OK")
</pallas_src>

<mosaic_0001>
module attributes {stable_mosaic.version = 11 : i64} {
  func.func @actor_kernel(%arg0: i32, %arg1: memref<8x16xf32, #tpu.memory_space<vmem>>, %arg2: memref<8x16xf32, #tpu.memory_space<vmem>>, %arg3: memref<1xf32, #tpu.memory_space<smem>>, %arg4: memref<16x32xbf16, #tpu.memory_space<vmem>>, %arg5: memref<16x32xbf16, #tpu.memory_space<vmem>>, %arg6: memref<1x32xf32, #tpu.memory_space<vmem>>, %arg7: memref<1x32xf32, #tpu.memory_space<vmem>>, %arg8: memref<1x32xf32, #tpu.memory_space<vmem>>, %arg9: memref<32x32xbf16, #tpu.memory_space<vmem>>, %arg10: memref<1x32xf32, #tpu.memory_space<vmem>>, %arg11: memref<1x32xf32, #tpu.memory_space<vmem>>, %arg12: memref<1x32xf32, #tpu.memory_space<vmem>>, %arg13: memref<32x32xbf16, #tpu.memory_space<vmem>>, %arg14: memref<1x32xf32, #tpu.memory_space<vmem>>, %arg15: memref<32x128xbf16, #tpu.memory_space<vmem>>, %arg16: memref<1x128xf32, #tpu.memory_space<vmem>>, %arg17: memref<8x128xf32, #tpu.memory_space<vmem>>, %arg18: memref<8x128xf32, #tpu.memory_space<vmem>>) attributes {dimension_semantics = [#tpu.dimension_semantics<parallel>], iteration_bounds = array<i64: 1>, scalar_prefetch = 0 : i64, scratch_operands = 0 : i64, tpu.core_type = #tpu.core_type<tc>, window_params = [{transform_indices = @transform_0, window_bounds = array<i64: 8, 16>}, {transform_indices = @transform_1, window_bounds = array<i64: 8, 16>}, {transform_indices = @transform_2, window_bounds = array<i64: 1>}, {pipeline_mode = #tpu.pipeline_mode<synchronous>, transform_indices = @transform_3, window_bounds = array<i64: 16, 32>}, {pipeline_mode = #tpu.pipeline_mode<synchronous>, transform_indices = @transform_4, window_bounds = array<i64: 16, 32>}, {pipeline_mode = #tpu.pipeline_mode<synchronous>, transform_indices = @transform_5, window_bounds = array<i64: 1, 32>}, {pipeline_mode = #tpu.pipeline_mode<synchronous>, transform_indices = @transform_6, window_bounds = array<i64: 1, 32>}, {pipeline_mode = #tpu.pipeline_mode<synchronous>, transform_indices = @transform_7, window_bounds = array<i64: 1, 32>}, {pipeline_mode = #tpu.pipeline_mode<synchronous>, transform_indices = @transform_8, window_bounds = array<i64: 32, 32>}, {pipeline_mode = #tpu.pipeline_mode<synchronous>, transform_indices = @transform_9, window_bounds = array<i64: 1, 32>}, {pipeline_mode = #tpu.pipeline_mode<synchronous>, transform_indices = @transform_10, window_bounds = array<i64: 1, 32>}, {pipeline_mode = #tpu.pipeline_mode<synchronous>, transform_indices = @transform_11, window_bounds = array<i64: 1, 32>}, {pipeline_mode = #tpu.pipeline_mode<synchronous>, transform_indices = @transform_12, window_bounds = array<i64: 32, 32>}, {pipeline_mode = #tpu.pipeline_mode<synchronous>, transform_indices = @transform_13, window_bounds = array<i64: 1, 32>}, {pipeline_mode = #tpu.pipeline_mode<synchronous>, transform_indices = @transform_14, window_bounds = array<i64: 32, 128>}, {pipeline_mode = #tpu.pipeline_mode<synchronous>, transform_indices = @transform_15, window_bounds = array<i64: 1, 128>}, {transform_indices = @transform_16, window_bounds = array<i64: 8, 128>}, {transform_indices = @transform_17, window_bounds = array<i64: 8, 128>}]} {
    %c0 = arith.constant 0 : index
    %c0_0 = arith.constant 0 : index
    %0 = vector.load %arg1[%c0, %c0_0] : memref<8x16xf32, #tpu.memory_space<vmem>>, vector<8x16xf32>
    %1 = arith.truncf %0 : vector<8x16xf32> to vector<8x16xbf16>
    %c0_1 = arith.constant 0 : index
    %c0_2 = arith.constant 0 : index
    %2 = vector.load %arg2[%c0_1, %c0_2] : memref<8x16xf32, #tpu.memory_space<vmem>>, vector<8x16xf32>
    %3 = arith.truncf %2 : vector<8x16xf32> to vector<8x16xbf16>
    %c0_3 = arith.constant 0 : index
    %c0_4 = arith.constant 0 : index
    %4 = vector.load %arg4[%c0_3, %c0_4] : memref<16x32xbf16, #tpu.memory_space<vmem>>, vector<16x32xbf16>
    %cst = arith.constant dense<0.000000e+00> : vector<8x32xf32>
    %5 = tpu.matmul %1, %4, %cst {dimension_numbers = #tpu.dot_dimension_numbers<[1], [0], [0], [1], [0, 0, 1, 1], [], []>} : vector<8x16xbf16>, vector<16x32xbf16>, vector<8x32xf32> -> vector<8x32xf32>
    %c0_5 = arith.constant 0 : index
    %c0_6 = arith.constant 0 : index
    %6 = vector.load %arg5[%c0_5, %c0_6] : memref<16x32xbf16, #tpu.memory_space<vmem>>, vector<16x32xbf16>
    %cst_7 = arith.constant dense<0.000000e+00> : vector<8x32xf32>
    %7 = tpu.matmul %3, %6, %cst_7 {dimension_numbers = #tpu.dot_dimension_numbers<[1], [0], [0], [1], [0, 0, 1, 1], [], []>} : vector<8x16xbf16>, vector<16x32xbf16>, vector<8x32xf32> -> vector<8x32xf32>
    %8 = arith.addf %5, %7 : vector<8x32xf32>
    %c0_8 = arith.constant 0 : index
    %c0_9 = arith.constant 0 : index
    %9 = vector.load %arg6[%c0_8, %c0_9] : memref<1x32xf32, #tpu.memory_space<vmem>>, vector<1x32xf32>
    %10 = vector.broadcast %9 : vector<1x32xf32> to vector<8x32xf32>
    %11 = arith.addf %8, %10 : vector<8x32xf32>
    %c0_10 = arith.constant 0 : index
    %c0_11 = arith.constant 0 : index
    %12 = vector.load %arg7[%c0_10, %c0_11] : memref<1x32xf32, #tpu.memory_space<vmem>>, vector<1x32xf32>
    %c0_12 = arith.constant 0 : index
    %c0_13 = arith.constant 0 : index
    %13 = vector.load %arg8[%c0_12, %c0_13] : memref<1x32xf32, #tpu.memory_space<vmem>>, vector<1x32xf32>
    %cst_14 = arith.constant dense<0.000000e+00> : vector<8xf32>
    %14 = vector.multi_reduction <add>, %11, %cst_14 [1] : vector<8x32xf32> to vector<8xf32>
    %15 = vector.shape_cast %14 : vector<8xf32> to vector<8x1xf32>
    %cst_15 = arith.constant 3.200000e+01 : f32
    %16 = vector.broadcast %cst_15 : f32 to vector<8x1xf32>
    %17 = arith.divf %15, %16 : vector<8x1xf32>
    %18 = vector.broadcast %17 : vector<8x1xf32> to vector<8x32xf32>
    %19 = arith.subf %11, %18 : vector<8x32xf32>
    %20 = arith.mulf %19, %19 : vector<8x32xf32>
    %cst_16 = arith.constant dense<0.000000e+00> : vector<8xf32>
    %21 = vector.multi_reduction <add>, %20, %cst_16 [1] : vector<8x32xf32> to vector<8xf32>
    %22 = vector.shape_cast %21 : vector<8xf32> to vector<8x1xf32>
    %cst_17 = arith.constant 3.200000e+01 : f32
    %23 = vector.broadcast %cst_17 : f32 to vector<8x1xf32>
    %24 = arith.divf %22, %23 : vector<8x1xf32>
    %25 = vector.broadcast %17 : vector<8x1xf32> to vector<8x32xf32>
    %26 = arith.subf %11, %25 : vector<8x32xf32>
    %cst_18 = arith.constant 9.99999974E-6 : f32
    %27 = vector.broadcast %cst_18 : f32 to vector<8x1xf32>
    %28 = arith.addf %24, %27 : vector<8x1xf32>
    %29 = math.rsqrt %28 : vector<8x1xf32>
    %30 = vector.broadcast %29 : vector<8x1xf32> to vector<8x32xf32>
    %31 = arith.mulf %26, %30 : vector<8x32xf32>
    %32 = vector.broadcast %12 : vector<1x32xf32> to vector<8x32xf32>
    %33 = arith.mulf %31, %32 : vector<8x32xf32>
    %34 = vector.broadcast %13 : vector<1x32xf32> to vector<8x32xf32>
    %35 = arith.addf %33, %34 : vector<8x32xf32>
    %36 = math.tanh %35 : vector<8x32xf32>
    %37 = arith.truncf %36 : vector<8x32xf32> to vector<8x32xbf16>
    %c0_19 = arith.constant 0 : index
    %c0_20 = arith.constant 0 : index
    %38 = vector.load %arg9[%c0_19, %c0_20] : memref<32x32xbf16, #tpu.memory_space<vmem>>, vector<32x32xbf16>
    %cst_21 = arith.constant dense<0.000000e+00> : vector<8x32xf32>
    %39 = tpu.matmul %37, %38, %cst_21 {dimension_numbers = #tpu.dot_dimension_numbers<[1], [0], [0], [1], [0, 0, 1, 1], [], []>} : vector<8x32xbf16>, vector<32x32xbf16>, vector<8x32xf32> -> vector<8x32xf32>
    %c0_22 = arith.constant 0 : index
    %c0_23 = arith.constant 0 : index
    %40 = vector.load %arg10[%c0_22, %c0_23] : memref<1x32xf32, #tpu.memory_space<vmem>>, vector<1x32xf32>
    %41 = vector.broadcast %40 : vector<1x32xf32> to vector<8x32xf32>
    %42 = arith.addf %39, %41 : vector<8x32xf32>
    %c0_24 = arith.constant 0 : index
    %c0_25 = arith.constant 0 : index
    %43 = vector.load %arg11[%c0_24, %c0_25] : memref<1x32xf32, #tpu.memory_space<vmem>>, vector<1x32xf32>
    %c0_26 = arith.constant 0 : index
    %c0_27 = arith.constant 0 : index
    %44 = vector.load %arg12[%c0_26, %c0_27] : memref<1x32xf32, #tpu.memory_space<vmem>>, vector<1x32xf32>
    %cst_28 = arith.constant dense<0.000000e+00> : vector<8xf32>
    %45 = vector.multi_reduction <add>, %42, %cst_28 [1] : vector<8x32xf32> to vector<8xf32>
    %46 = vector.shape_cast %45 : vector<8xf32> to vector<8x1xf32>
    %cst_29 = arith.constant 3.200000e+01 : f32
    %47 = vector.broadcast %cst_29 : f32 to vector<8x1xf32>
    %48 = arith.divf %46, %47 : vector<8x1xf32>
    %49 = vector.broadcast %48 : vector<8x1xf32> to vector<8x32xf32>
    %50 = arith.subf %42, %49 : vector<8x32xf32>
    %51 = arith.mulf %50, %50 : vector<8x32xf32>
    %cst_30 = arith.constant dense<0.000000e+00> : vector<8xf32>
    %52 = vector.multi_reduction <add>, %51, %cst_30 [1] : vector<8x32xf32> to vector<8xf32>
    %53 = vector.shape_cast %52 : vector<8xf32> to vector<8x1xf32>
    %cst_31 = arith.constant 3.200000e+01 : f32
    %54 = vector.broadcast %cst_31 : f32 to vector<8x1xf32>
    %55 = arith.divf %53, %54 : vector<8x1xf32>
    %56 = vector.broadcast %48 : vector<8x1xf32> to vector<8x32xf32>
    %57 = arith.subf %42, %56 : vector<8x32xf32>
    %cst_32 = arith.constant 9.99999974E-6 : f32
    %58 = vector.broadcast %cst_32 : f32 to vector<8x1xf32>
    %59 = arith.addf %55, %58 : vector<8x1xf32>
    %60 = math.rsqrt %59 : vector<8x1xf32>
    %61 = vector.broadcast %60 : vector<8x1xf32> to vector<8x32xf32>
    %62 = arith.mulf %57, %61 : vector<8x32xf32>
    %63 = vector.broadcast %43 : vector<1x32xf32> to vector<8x32xf32>
    %64 = arith.mulf %62, %63 : vector<8x32xf32>
    %65 = vector.broadcast %44 : vector<1x32xf32> to vector<8x32xf32>
    %66 = arith.addf %64, %65 : vector<8x32xf32>
    %67 = math.tanh %66 : vector<8x32xf32>
    %68 = arith.truncf %67 : vector<8x32xf32> to vector<8x32xbf16>
    %c0_33 = arith.constant 0 : index
    %c0_34 = arith.constant 0 : index
    %69 = vector.load %arg13[%c0_33, %c0_34] : memref<32x32xbf16, #tpu.memory_space<vmem>>, vector<32x32xbf16>
    %cst_35 = arith.constant dense<0.000000e+00> : vector<8x32xf32>
    %70 = tpu.matmul %68, %69, %cst_35 {dimension_numbers = #tpu.dot_dimension_numbers<[1], [0], [0], [1], [0, 0, 1, 1], [], []>} : vector<8x32xbf16>, vector<32x32xbf16>, vector<8x32xf32> -> vector<8x32xf32>
    %c0_36 = arith.constant 0 : index
    %c0_37 = arith.constant 0 : index
    %71 = vector.load %arg14[%c0_36, %c0_37] : memref<1x32xf32, #tpu.memory_space<vmem>>, vector<1x32xf32>
    %72 = vector.broadcast %71 : vector<1x32xf32> to vector<8x32xf32>
    %73 = arith.addf %70, %72 : vector<8x32xf32>
    %cst_38 = arith.constant 0.000000e+00 : f32
    %74 = vector.broadcast %cst_38 : f32 to vector<8x32xf32>
    %75 = arith.maximumf %73, %74 : vector<8x32xf32>
    %76 = arith.truncf %75 : vector<8x32xf32> to vector<8x32xbf16>
    %c0_39 = arith.constant 0 : index
    %c0_40 = arith.constant 0 : index
    %77 = vector.load %arg15[%c0_39, %c0_40] : memref<32x128xbf16, #tpu.memory_space<vmem>>, vector<32x128xbf16>
    %cst_41 = arith.constant dense<0.000000e+00> : vector<8x128xf32>
    %78 = tpu.matmul %76, %77, %cst_41 {dimension_numbers = #tpu.dot_dimension_numbers<[1], [0], [0], [1], [0, 0, 1, 1], [], []>} : vector<8x32xbf16>, vector<32x128xbf16>, vector<8x128xf32> -> vector<8x128xf32>
    %c0_42 = arith.constant 0 : index
    %c0_43 = arith.constant 0 : index
    %79 = vector.load %arg16[%c0_42, %c0_43] : memref<1x128xf32, #tpu.memory_space<vmem>>, vector<1x128xf32>
    %80 = vector.broadcast %79 : vector<1x128xf32> to vector<8x128xf32>
    %81 = arith.addf %78, %80 : vector<8x128xf32>
    %82 = math.tanh %81 : vector<8x128xf32>
    %c0_44 = arith.constant 0 : index
    %c0_45 = arith.constant 0 : index
    %83 = vector.load %arg17[%c0_44, %c0_45] : memref<8x128xf32, #tpu.memory_space<vmem>>, vector<8x128xf32>
    tpu.vector_store %arg17[%c0_44, %c0_45], %82 {strides = array<i32>} : memref<8x128xf32, #tpu.memory_space<vmem>>, vector<8x128xf32>,
    %cst_46 = arith.constant 1.000000e+00 : f32
    %84 = vector.broadcast %cst_46 : f32 to vector<8x128xf32>
    %c0_47 = arith.constant 0 : index
    %85 = memref.load %arg3[%c0_47] : memref<1xf32, #tpu.memory_space<smem>>
    %86 = vector.broadcast %85 : f32 to vector<8x128xf32>
    %87 = arith.mulf %84, %86 : vector<8x128xf32>
    %c0_48 = arith.constant 0 : index
    %c0_49 = arith.constant 0 : index
    %88 = vector.load %arg18[%c0_48, %c0_49] : memref<8x128xf32, #tpu.memory_space<vmem>>, vector<8x128xf32>
    tpu.vector_store %arg18[%c0_48, %c0_49], %87 {strides = array<i32>} : memref<8x128xf32, #tpu.memory_space<vmem>>, vector<8x128xf32>,
    return
  }
  func.func @transform_0(%arg0: i32) -> (i32, i32) {
    %c0_i32 = arith.constant 0 : i32
    %c0_i32_0 = arith.constant 0 : i32
    return %arg0, %c0_i32 : i32, i32
  }
  func.func @transform_1(%arg0: i32) -> (i32, i32) {
    %c0_i32 = arith.constant 0 : i32
    %c0_i32_0 = arith.constant 0 : i32
    return %arg0, %c0_i32 : i32, i32
  }
  func.func @transform_2(%arg0: i32) -> i32 {
    %c0_i32 = arith.constant 0 : i32
    %c0_i32_0 = arith.constant 0 : i32
    return %c0_i32 : i32
  }
  func.func @transform_3(%arg0: i32) -> (i32, i32) {
    %c0_i32 = arith.constant 0 : i32
    %c0_i32_0 = arith.constant 0 : i32
    %c0_i32_1 = arith.constant 0 : i32
    return %c0_i32, %c0_i32_0 : i32, i32
  }
  func.func @transform_4(%arg0: i32) -> (i32, i32) {
    %c0_i32 = arith.constant 0 : i32
    %c0_i32_0 = arith.constant 0 : i32
    %c0_i32_1 = arith.constant 0 : i32
    return %c0_i32, %c0_i32_0 : i32, i32
  }
  func.func @transform_5(%arg0: i32) -> (i32, i32) {
    %c0_i32 = arith.constant 0 : i32
    %c0_i32_0 = arith.constant 0 : i32
    %c0_i32_1 = arith.constant 0 : i32
    return %c0_i32, %c0_i32_0 : i32, i32
  }
  func.func @transform_6(%arg0: i32) -> (i32, i32) {
    %c0_i32 = arith.constant 0 : i32
    %c0_i32_0 = arith.constant 0 : i32
    %c0_i32_1 = arith.constant 0 : i32
    return %c0_i32, %c0_i32_0 : i32, i32
  }
  func.func @transform_7(%arg0: i32) -> (i32, i32) {
    %c0_i32 = arith.constant 0 : i32
    %c0_i32_0 = arith.constant 0 : i32
    %c0_i32_1 = arith.constant 0 : i32
    return %c0_i32, %c0_i32_0 : i32, i32
  }
  func.func @transform_8(%arg0: i32) -> (i32, i32) {
    %c0_i32 = arith.constant 0 : i32
    %c0_i32_0 = arith.constant 0 : i32
    %c0_i32_1 = arith.constant 0 : i32
    return %c0_i32, %c0_i32_0 : i32, i32
  }
  func.func @transform_9(%arg0: i32) -> (i32, i32) {
    %c0_i32 = arith.constant 0 : i32
    %c0_i32_0 = arith.constant 0 : i32
    %c0_i32_1 = arith.constant 0 : i32
    return %c0_i32, %c0_i32_0 : i32, i32
  }
  func.func @transform_10(%arg0: i32) -> (i32, i32) {
    %c0_i32 = arith.constant 0 : i32
    %c0_i32_0 = arith.constant 0 : i32
    %c0_i32_1 = arith.constant 0 : i32
    return %c0_i32, %c0_i32_0 : i32, i32
  }
  func.func @transform_11(%arg0: i32) -> (i32, i32) {
    %c0_i32 = arith.constant 0 : i32
    %c0_i32_0 = arith.constant 0 : i32
    %c0_i32_1 = arith.constant 0 : i32
    return %c0_i32, %c0_i32_0 : i32, i32
  }
  func.func @transform_12(%arg0: i32) -> (i32, i32) {
    %c0_i32 = arith.constant 0 : i32
    %c0_i32_0 = arith.constant 0 : i32
    %c0_i32_1 = arith.constant 0 : i32
    return %c0_i32, %c0_i32_0 : i32, i32
  }
  func.func @transform_13(%arg0: i32) -> (i32, i32) {
    %c0_i32 = arith.constant 0 : i32
    %c0_i32_0 = arith.constant 0 : i32
    %c0_i32_1 = arith.constant 0 : i32
    return %c0_i32, %c0_i32_0 : i32, i32
  }
  func.func @transform_14(%arg0: i32) -> (i32, i32) {
    %c0_i32 = arith.constant 0 : i32
    %c0_i32_0 = arith.constant 0 : i32
    %c0_i32_1 = arith.constant 0 : i32
    return %c0_i32, %c0_i32_0 : i32, i32
  }
  func.func @transform_15(%arg0: i32) -> (i32, i32) {
    %c0_i32 = arith.constant 0 : i32
    %c0_i32_0 = arith.constant 0 : i32
    %c0_i32_1 = arith.constant 0 : i32
    return %c0_i32, %c0_i32_0 : i32, i32
  }
  func.func @transform_16(%arg0: i32) -> (i32, i32) {
    %c0_i32 = arith.constant 0 : i32
    %c0_i32_0 = arith.constant 0 : i32
    return %arg0, %c0_i32 : i32, i32
  }
  func.func @transform_17(%arg0: i32) -> (i32, i32) {
    %c0_i32 = arith.constant 0 : i32
    %c0_i32_0 = arith.constant 0 : i32
    return %arg0, %c0_i32 : i32, i32
  }
}

</mosaic_0001>

<llo_original>
// kernel: tpu_custom_call.1
$region0: #{tpu_custom_call.1}
  #allocation0 [shape = 'u32[]', space=smem, size = 0x4, offset = 0x4, fixed_abs, tag = 'smem constant byte address 0x4 - core index']
  #allocation1 [shape = 'u32[72,128]{1,0:T(1,128)}', space=vmem, size = 0x9000, scoped, tag = 'internal scratch']
  #allocation2 [shape = 'f32[1]{0:T(128)S(6)}', space=smem, size = 0x200, scoped, tag = 'scoped memory for tpu_custom_call.1']
  %s0 = inlined_call_operand.hbm [shape: f32[8,16], index: 0, kind: input, shape index: {}]
  %s1 = inlined_call_operand.hbm [shape: f32[8,16], index: 1, kind: input, shape index: {}]
  %s2 = inlined_call_operand.<no memory space> [shape: f32[1], index: 2, kind: input, shape index: {}]
  %s3 = inlined_call_operand.hbm [shape: bf16[16,32], index: 3, kind: input, shape index: {}]
  %s4 = inlined_call_operand.hbm [shape: bf16[16,32], index: 4, kind: input, shape index: {}]
  %s5 = inlined_call_operand.vmem [shape: f32[1,32], index: 5, kind: input, shape index: {}]
  %s6 = inlined_call_operand.vmem [shape: f32[1,32], index: 6, kind: input, shape index: {}]
  %s7 = inlined_call_operand.vmem [shape: f32[1,32], index: 7, kind: input, shape index: {}]
  %s8 = inlined_call_operand.hbm [shape: bf16[32,32], index: 8, kind: input, shape index: {}]
  %s9 = inlined_call_operand.vmem [shape: f32[1,32], index: 9, kind: input, shape index: {}]
  %s10 = inlined_call_operand.vmem [shape: f32[1,32], index: 10, kind: input, shape index: {}]
  %s11 = inlined_call_operand.vmem [shape: f32[1,32], index: 11, kind: input, shape index: {}]
  %s12 = inlined_call_operand.hbm [shape: bf16[32,32], index: 12, kind: input, shape index: {}]
  %s13 = inlined_call_operand.vmem [shape: f32[1,32], index: 13, kind: input, shape index: {}]
  %s14 = inlined_call_operand.hbm [shape: bf16[32,128], index: 14, kind: input, shape index: {}]
  %s15 = inlined_call_operand.vmem [shape: f32[1,128], index: 15, kind: input, shape index: {}]
  %s16 = inlined_call_operand.hbm [shape: f32[8,128], index: 16, kind: output, shape index: {0}]
  %s17 = inlined_call_operand.hbm [shape: f32[8,128], index: 17, kind: output, shape index: {1}]
  %18 = xla_tuple %s16, %s17
  %s19 = sld [smem:[#allocation0]]
  $region110: #{tpu_custom_call.1} parent=0
    _
  %s21 = ssub.s32 1, %s19
  %s22 = scalar_select 0, %s21, %s19
  %23 = sst [smem:[#allocation2]] %s2
  $region1: #{tpu_custom_call.1} parent=0
    #allocation3 [shape = 'u8[4096]{0}', space=vmem, size = 0x1000, scoped, tag = 'input window, operand 0, single buffered']
    #allocation4 [shape = 's32[1]{0}', space=sflag, size = 0x4, scoped, tag = 'scoped memory for tpu_custom_call.1']
    #allocation5 [shape = 's32[1]{0}', space=sflag, size = 0x4, scoped, tag = 'scoped memory for tpu_custom_call.1']
    #allocation6 [shape = 'u8[4096]{0}', space=vmem, size = 0x1000, scoped, tag = 'input window, operand 1, single buffered']
    #allocation7 [shape = 's32[1]{0}', space=sflag, size = 0x4, scoped, tag = 'scoped memory for tpu_custom_call.1']
    #allocation8 [shape = 'u8[4096]{0}', space=vmem, size = 0x1000, scoped, tag = 'input window, operand 3, single buffered']
    #allocation9 [shape = 'u8[4096]{0}', space=vmem, size = 0x1000, scoped, tag = 'input window, operand 4, single buffered']
    #allocation10 [shape = 's32[1]{0}', space=sflag, size = 0x4, scoped, tag = 'scoped memory for tpu_custom_call.1']
    #allocation11 [shape = 'u8[8192]{0}', space=vmem, size = 0x2000, scoped, tag = 'input window, operand 8, single buffered']
    #allocation12 [shape = 'u8[8192]{0}', space=vmem, size = 0x2000, scoped, tag = 'input window, operand 12, single buffered']
    #allocation13 [shape = 's32[1]{0}', space=sflag, size = 0x4, scoped, tag = 'scoped memory for tpu_custom_call.1']
    #allocation14 [shape = 'u8[8192]{0}', space=vmem, size = 0x2000, scoped, tag = 'input window, operand 14, single buffered']
    #allocation15 [shape = 'u8[4096]{0}', space=vmem, size = 0x1000, scoped, tag = 'output window, operand 0, single buffered']
    #allocation16 [shape = 'u8[4096]{0}', space=vmem, size = 0x1000, scoped, tag = 'output window, operand 1, single buffered']
    #allocation17 [shape = 's32[1]{0}', space=sflag, size = 0x4, scoped, tag = 'scoped memory for tpu_custom_call.1']
    %24 = vsyncpa [#allocation4], 0
    %25 = vsyncpa [#allocation7], 0
    %26 = vsyncpa [#allocation10], 0
    %27 = vsyncpa [#allocation13], 0
    %28 = vsyncpa [#allocation5], 0
    %29 = vsyncpa [#allocation17], 0
    // Predicated region
    $region2: #{tpu_custom_call.1} parent=1 // pred_check
      _
    $region3: #{tpu_custom_call.1} parent=1 // pred_check_branch
      %31 = sbr.rel (0) target = $region5
    $region4: #{tpu_custom_call.1} parent=1 // pred_region
      %33 = vsyncadd [#allocation4], 0
      %s35 = sshll.u32 %s0, 4
      %s36 = int_to_ptr.hbm [resolvable:$true] %s35
      %s37 = sshll.u32 [#allocation3], 4
      %s38 = int_to_ptr.vmem [resolvable:$true] %s37
      %40 = dma.hbm_to_vmem [thread:$0]  %s36, 128, %s38, [#allocation4]
    $region5: #{tpu_custom_call.1} parent=1 // pred_fallthru
      _
    // Predicated region
    $region6: #{tpu_custom_call.1} parent=1 // pred_check
      _
    $region7: #{tpu_custom_call.1} parent=1 // pred_check_branch
      %42 = sbr.rel (0) target = $region9
    $region8: #{tpu_custom_call.1} parent=1 // pred_region
      %44 = vsyncadd [#allocation7], 0
      %s46 = sshll.u32 %s1, 4
      %s47 = int_to_ptr.hbm [resolvable:$true] %s46
      %s48 = sshll.u32 [#allocation6], 4
      %s49 = int_to_ptr.vmem [resolvable:$true] %s48
      %51 = dma.hbm_to_vmem [thread:$0]  %s47, 128, %s49, [#allocation7]
    $region9: #{tpu_custom_call.1} parent=1 // pred_fallthru
      _
    // Predicated region
    $region10: #{tpu_custom_call.1} parent=1 // pred_check
      _
    $region11: #{tpu_custom_call.1} parent=1 // pred_check_branch
      %53 = sbr.rel (0) target = $region13
    $region12: #{tpu_custom_call.1} parent=1 // pred_region
      _
    $region13: #{tpu_custom_call.1} parent=1 // pred_fallthru
      _
    // Predicated region
    $region14: #{tpu_custom_call.1} parent=1 // pred_check
      _
    $region15: #{tpu_custom_call.1} parent=1 // pred_check_branch
      %55 = sbr.rel (0) target = $region17
    $region16: #{tpu_custom_call.1} parent=1 // pred_region
      %57 = vsyncadd [#allocation7], 0
      %s58 = sshll.u32 %s3, 4
      %s59 = int_to_ptr.hbm [resolvable:$true] %s58
      %s60 = sshll.u32 [#allocation8], 4
      %s61 = int_to_ptr.vmem [resolvable:$true] %s60
      %66 = dma.hbm_to_vmem [thread:$0]  %s59, 128, %s61, [#allocation7], 64, 64, 4
    $region17: #{tpu_custom_call.1} parent=1 // pred_fallthru
      _
    // Predicated region
    $region18: #{tpu_custom_call.1} parent=1 // pred_check
      _
    $region19: #{tpu_custom_call.1} parent=1 // pred_check_branch
      %68 = sbr.rel (0) target = $region21
    $region20: #{tpu_custom_call.1} parent=1 // pred_region
      %70 = vsyncadd [#allocation10], 0
      %s71 = sshll.u32 %s4, 4
      %s72 = int_to_ptr.hbm [resolvable:$true] %s71
      %s73 = sshll.u32 [#allocation9], 4
      %s74 = int_to_ptr.vmem [resolvable:$true] %s73
      %79 = dma.hbm_to_vmem [thread:$0]  %s72, 128, %s74, [#allocation10], 64, 64, 4
    $region21: #{tpu_custom_call.1} parent=1 // pred_fallthru
      _
    // Predicated region
    $region22: #{tpu_custom_call.1} parent=1 // pred_check
      _
    $region23: #{tpu_custom_call.1} parent=1 // pred_check_branch
      %81 = sbr.rel (0) target = $region25
    $region24: #{tpu_custom_call.1} parent=1 // pred_region
      _
    $region25: #{tpu_custom_call.1} parent=1 // pred_fallthru
      _
    // Predicated region
    $region26: #{tpu_custom_call.1} parent=1 // pred_check
      _
    $region27: #{tpu_custom_call.1} parent=1 // pred_check_branch
      %83 = sbr.rel (0) target = $region29
    $region28: #{tpu_custom_call.1} parent=1 // pred_region
      _
    $region29: #{tpu_custom_call.1} parent=1 // pred_fallthru
      _
    // Predicated region
    $region30: #{tpu_custom_call.1} parent=1 // pred_check
      _
    $region31: #{tpu_custom_call.1} parent=1 // pred_check_branch
      %85 = sbr.rel (0) target = $region33
    $region32: #{tpu_custom_call.1} parent=1 // pred_region
      _
    $region33: #{tpu_custom_call.1} parent=1 // pred_fallthru
      _
    // Predicated region
    $region34: #{tpu_custom_call.1} parent=1 // pred_check
      _
    $region35: #{tpu_custom_call.1} parent=1 // pred_check_branch
      %87 = sbr.rel (0) target = $region37
    $region36: #{tpu_custom_call.1} parent=1 // pred_region
      %89 = vsyncadd [#allocation10], 0
      %s90 = sshll.u32 %s8, 4
      %s91 = int_to_ptr.hbm [resolvable:$true] %s90
      %s92 = sshll.u32 [#allocation11], 4
      %s93 = int_to_ptr.vmem [resolvable:$true] %s92
      %98 = dma.hbm_to_vmem [thread:$0]  %s91, 256, %s93, [#allocation10], 64, 64, 4
    $region37: #{tpu_custom_call.1} parent=1 // pred_fallthru
      _
    // Predicated region
    $region38: #{tpu_custom_call.1} parent=1 // pred_check
      _
    $region39: #{tpu_custom_call.1} parent=1 // pred_check_branch
      %100 = sbr.rel (0) target = $region41
    $region40: #{tpu_custom_call.1} parent=1 // pred_region
      _
    $region41: #{tpu_custom_call.1} parent=1 // pred_fallthru
      _
    // Predicated region
    $region42: #{tpu_custom_call.1} parent=1 // pred_check
      _
    $region43: #{tpu_custom_call.1} parent=1 // pred_check_branch
      %102 = sbr.rel (0) target = $region45
    $region44: #{tpu_custom_call.1} parent=1 // pred_region
      _
    $region45: #{tpu_custom_call.1} parent=1 // pred_fallthru
      _
    // Predicated region
    $region46: #{tpu_custom_call.1} parent=1 // pred_check
      _
    $region47: #{tpu_custom_call.1} parent=1 // pred_check_branch
      %104 = sbr.rel (0) target = $region49
    $region48: #{tpu_custom_call.1} parent=1 // pred_region
      _
    $region49: #{tpu_custom_call.1} parent=1 // pred_fallthru
      _
    // Predicated region
    $region50: #{tpu_custom_call.1} parent=1 // pred_check
      _
    $region51: #{tpu_custom_call.1} parent=1 // pred_check_branch
      %106 = sbr.rel (0) target = $region53
    $region52: #{tpu_custom_call.1} parent=1 // pred_region
      %108 = vsyncadd [#allocation13], 0
      %s109 = sshll.u32 %s12, 4
      %s110 = int_to_ptr.hbm [resolvable:$true] %s109
      %s111 = sshll.u32 [#allocation12], 4
      %s112 = int_to_ptr.vmem [resolvable:$true] %s111
      %117 = dma.hbm_to_vmem [thread:$0]  %s110, 256, %s112, [#allocation13], 64, 64, 4
    $region53: #{tpu_custom_call.1} parent=1 // pred_fallthru
      _
    // Predicated region
    $region54: #{tpu_custom_call.1} parent=1 // pred_check
      _
    $region55: #{tpu_custom_call.1} parent=1 // pred_check_branch
      %119 = sbr.rel (0) target = $region57
    $region56: #{tpu_custom_call.1} parent=1 // pred_region
      _
    $region57: #{tpu_custom_call.1} parent=1 // pred_fallthru
      _
    // Predicated region
    $region58: #{tpu_custom_call.1} parent=1 // pred_check
      _
    $region59: #{tpu_custom_call.1} parent=1 // pred_check_branch
      %121 = sbr.rel (0) target = $region61
    $region60: #{tpu_custom_call.1} parent=1 // pred_region
      %123 = vsyncadd [#allocation13], 0
      %s124 = sshll.u32 %s14, 4
      %s125 = int_to_ptr.hbm [resolvable:$true] %s124
      %s126 = sshll.u32 [#allocation14], 4
      %s127 = int_to_ptr.vmem [resolvable:$true] %s126
      %132 = dma.hbm_to_vmem [thread:$0]  %s125, 256, %s127, [#allocation13], 64, 64, 4
    $region61: #{tpu_custom_call.1} parent=1 // pred_fallthru
      _
    // Predicated region
    $region62: #{tpu_custom_call.1} parent=1 // pred_check
      _
    $region63: #{tpu_custom_call.1} parent=1 // pred_check_branch
      %134 = sbr.rel (0) target = $region65
    $region64: #{tpu_custom_call.1} parent=1 // pred_region
      _
    $region65: #{tpu_custom_call.1} parent=1 // pred_fallthru
      _
    // Predicated region
    $region66: #{tpu_custom_call.1} parent=1 // pred_check
      _
    $region67: #{tpu_custom_call.1} parent=1 // pred_check_branch
      %136 = sbr.rel (0) target = $region69
    $region68: #{tpu_custom_call.1} parent=1 // pred_region
      %138 = dma.done [#allocation4], 128
    $region69: #{tpu_custom_call.1} parent=1 // pred_fallthru
      _
    // Predicated region
    $region70: #{tpu_custom_call.1} parent=1 // pred_check
      _
    $region71: #{tpu_custom_call.1} parent=1 // pred_check_branch
      %140 = sbr.rel (0) target = $region73
    $region72: #{tpu_custom_call.1} parent=1 // pred_region
      %142 = dma.done [#allocation7], 128
    $region73: #{tpu_custom_call.1} parent=1 // pred_fallthru
      _
    // Predicated region
    $region74: #{tpu_custom_call.1} parent=1 // pred_check
      _
    $region75: #{tpu_custom_call.1} parent=1 // pred_check_branch
      %144 = sbr.rel (0) target = $region77
    $region76: #{tpu_custom_call.1} parent=1 // pred_region
      %146 = dma.done [#allocation7], 128
    $region77: #{tpu_custom_call.1} parent=1 // pred_fallthru
      _
    // Predicated region
    $region78: #{tpu_custom_call.1} parent=1 // pred_check
      _
    $region79: #{tpu_custom_call.1} parent=1 // pred_check_branch
      %148 = sbr.rel (0) target = $region81
    $region80: #{tpu_custom_call.1} parent=1 // pred_region
      %150 = dma.done [#allocation10], 128
    $region81: #{tpu_custom_call.1} parent=1 // pred_fallthru
      _
    // Predicated region
    $region82: #{tpu_custom_call.1} parent=1 // pred_check
      _
    $region83: #{tpu_custom_call.1} parent=1 // pred_check_branch
      %152 = sbr.rel (0) target = $region85
    $region84: #{tpu_custom_call.1} parent=1 // pred_region
      %154 = dma.done [#allocation10], 256
    $region85: #{tpu_custom_call.1} parent=1 // pred_fallthru
      _
    // Predicated region
    $region86: #{tpu_custom_call.1} parent=1 // pred_check
      _
    $region87: #{tpu_custom_call.1} parent=1 // pred_check_branch
      %156 = sbr.rel (0) target = $region89
    $region88: #{tpu_custom_call.1} parent=1 // pred_region
      %158 = dma.done [#allocation13], 256
    $region89: #{tpu_custom_call.1} parent=1 // pred_fallthru
      _
    // Predicated region
    $region90: #{tpu_custom_call.1} parent=1 // pred_check
      _
    $region91: #{tpu_custom_call.1} parent=1 // pred_check_branch
      %160 = sbr.rel (0) target = $region93
    $region92: #{tpu_custom_call.1} parent=1 // pred_region
      %162 = dma.done [#allocation13], 256
    $region93: #{tpu_custom_call.1} parent=1 // pred_fallthru
      _
    %v164 = vld [vmem:[#allocation3] sm:$0xff]
    %v165 = vpack.c.bf16 %v164, %v164
    %v166 = vld [vmem:[#allocation6] sm:$0xff]
    %v167 = vpack.c.bf16 %v166, %v166
    %v168 = vld [vmem:[#allocation8] sm:$0xf]
    %v169 = vld [vmem:[#allocation8 + $0x4] sm:$0xf]
    %v170 = vld [vmem:[#allocation9] sm:$0xf]
    %v171 = vld [vmem:[#allocation9 + $0x4] sm:$0xf]
    %v174 = vunpack.c.l.b16 %v170
    %v175 = vunpack.c.l.b16 %v171
    %v176 = vpack.c.b16 %v175, %v174
    %vm178 = vcmask 130048
    %v180 = vsel %vm178, %v167, 0
    %182 = vmatpush.bf16.msra.mxu0 0
    %183 = vmatpush.bf16.msra.mxu0 0
    %184 = vmatpush.bf16.msra.mxu0 0
    %185 = vmatpush.bf16.msra.mxu0 0
    %186 = vmatpush.bf16.msra.mxu0 0
    %187 = vmatpush.bf16.msra.mxu0 0
    %188 = vmatpush.bf16.msra.mxu0 0
    %189 = vmatpush.bf16.msra.mxu0 %v176
    %190 = vmatmul.bf16.gmra.mxu0 %v180
    %v191 = vpop.f32.mrf.mxu0
    %v192 = vadd.f32 0.0, %v191
    %v193 = vpop.f32.mrf.mxu0
    %194 = vdwg.mxu0
    %v197 = vunpack.c.l.b16 %v168
    %v198 = vunpack.c.l.b16 %v169
    %v199 = vpack.c.b16 %v198, %v197
    %v202 = vsel %vm178, %v165, 0
    %204 = vmatpush.bf16.msra.mxu0 0
    %205 = vmatpush.bf16.msra.mxu0 0
    %206 = vmatpush.bf16.msra.mxu0 0
    %207 = vmatpush.bf16.msra.mxu0 0
    %208 = vmatpush.bf16.msra.mxu0 0
    %209 = vmatpush.bf16.msra.mxu0 0
    %210 = vmatpush.bf16.msra.mxu0 0
    %211 = vmatpush.bf16.msra.mxu0 %v199
    %212 = vmatmul.bf16.gmra.mxu0 %v202
    %v213 = vpop.f32.mrf.mxu0
    %v214 = vadd.f32 %v192, %v213
    %v215 = vpop.f32.mrf.mxu0
    %216 = vdwg.mxu0
    %v217 = vld [vmem:[%s5] sm:$0x1]
    %v219 = vperm.slane %v217, 0
    %v221 = vadd.f32 %v214, %v219
    %v222 = vld [vmem:[%s6] sm:$0x1]
    %v223 = vld [vmem:[%s7] sm:$0x1]
    %vm224 = vcmask 261120
    %v225 = vsel %vm224, %v221, 0.0
    %226 = vadd.xlane.f32.xlu0 %v225
    %v227 = vpop.xlane.xlu0 %226
    %v228 = vrcp.pop 32.0
    %v229 = vmul.f32 32.0, %v228
    %v230 = vsub.f32 1.0, %v229
    %v231 = vmul.f32 %v228, %v230
    %v232 = vadd.f32 %v228, %v231
    %vm233 = vweird.f32 %v228
    %v234 = vsel %vm233, %v228, %v232
    %v235 = vmul.f32 %v227, %v234
    %v236 = vsub.f32 %v221, %v235
    %v237 = vmul.f32 %v236, %v236
    %v238 = vsel %vm224, %v237, 0.0
    %239 = vadd.xlane.f32.xlu0 %v238
    %v240 = vpop.xlane.xlu0 %239
    %v241 = vmul.f32 %v240, %v234
    %v242 = vadd.f32 %v241, 1e-05
    %v243 = vrsqrt.pop %v242
    %v244 = vmul.f32 %v243, %v242
    %v245 = vmul.f32 %v244, %v243
    %v246 = vmul.f32 0.5, %v245
    %v247 = vsub.f32 1.5, %v246
    %v248 = vmul.f32 %v243, %v247
    %vm249 = vweird.f32 %v242
    %vm250 = vweird.f32 %v243
    %vm251 = vmor %vm249, %vm250
    %v252 = vsel %vm251, %v243, %v248
    %v253 = vmul.f32 %v236, %v252
    %v255 = vperm.slane %v222, 0
    %v257 = vmul.f32 %v253, %v255
    %v259 = vperm.slane %v223, 0
    %v261 = vadd.f32 %v257, %v259
    %v262 = vtanh.pop %v261
    %v263 = vpack.c.bf16 %v262, %v262
    %v264 = vld [vmem:[#allocation11] sm:$0xf]
    %v265 = vld [vmem:[#allocation11 + $0x4] sm:$0xf]
    %v266 = vld [vmem:[#allocation11 + $0x8] sm:$0xf]
    %v267 = vld [vmem:[#allocation11 + $0xc] sm:$0xf]
    %v268 = vld [vmem:[%s9] sm:$0x1]
    %v270 = vperm.slane %v268, 0
    %v276 = vunpack.c.l.b16 %v264
    %v277 = vunpack.c.l.b16 %v265
    %v278 = vunpack.c.l.b16 %v266
    %v279 = vunpack.c.l.b16 %v267
    %v280 = vpack.c.b16 %v277, %v276
    %v281 = vpack.c.b16 %v279, %v278
    %v285 = vsel %vm224, %v263, 0
    %287 = vmatpush.bf16.msra.mxu0 0
    %288 = vmatpush.bf16.msra.mxu0 0
    %289 = vmatpush.bf16.msra.mxu0 0
    %290 = vmatpush.bf16.msra.mxu0 0
    %291 = vmatpush.bf16.msra.mxu0 0
    %292 = vmatpush.bf16.msra.mxu0 0
    %293 = vmatpush.bf16.msra.mxu0 %v281
    %294 = vmatpush.bf16.msra.mxu0 %v280
    %295 = vmatmul.bf16.gmra.mxu0 %v285
    %v296 = vpop.f32.mrf.mxu0
    %v297 = vadd.f32 %v270, %v296
    %v298 = vpop.f32.mrf.mxu0
    %299 = vdwg.mxu0
    %v300 = vld [vmem:[%s10] sm:$0x1]
    %v301 = vld [vmem:[%s11] sm:$0x1]
    %v302 = vsel %vm224, %v297, 0.0
    %303 = vadd.xlane.f32.xlu0 %v302
    %v304 = vpop.xlane.xlu0 %303
    %v305 = vmul.f32 %v304, %v234
    %v306 = vsub.f32 %v297, %v305
    %v307 = vmul.f32 %v306, %v306
    %v308 = vsel %vm224, %v307, 0.0
    %309 = vadd.xlane.f32.xlu0 %v308
    %v310 = vpop.xlane.xlu0 %309
    %v311 = vmul.f32 %v310, %v234
    %v312 = vadd.f32 %v311, 1e-05
    %v313 = vrsqrt.pop %v312
    %v314 = vmul.f32 %v313, %v312
    %v315 = vmul.f32 %v314, %v313
    %v316 = vmul.f32 0.5, %v315
    %v317 = vsub.f32 1.5, %v316
    %v318 = vmul.f32 %v313, %v317
    %vm319 = vweird.f32 %v312
    %vm320 = vweird.f32 %v313
    %vm321 = vmor %vm319, %vm320
    %v322 = vsel %vm321, %v313, %v318
    %v323 = vmul.f32 %v306, %v322
    %v325 = vperm.slane %v300, 0
    %v327 = vmul.f32 %v323, %v325
    %v329 = vperm.slane %v301, 0
    %v331 = vadd.f32 %v327, %v329
    %v332 = vtanh.pop %v331
    %v333 = vpack.c.bf16 %v332, %v332
    %v334 = vld [vmem:[#allocation12] sm:$0xf]
    %v335 = vld [vmem:[#allocation12 + $0x4] sm:$0xf]
    %v336 = vld [vmem:[#allocation12 + $0x8] sm:$0xf]
    %v337 = vld [vmem:[#allocation12 + $0xc] sm:$0xf]
    %v338 = vld [vmem:[%s13] sm:$0x1]
    %v340 = vperm.slane %v338, 0
    %v346 = vunpack.c.l.b16 %v334
    %v347 = vunpack.c.l.b16 %v335
    %v348 = vunpack.c.l.b16 %v336
    %v349 = vunpack.c.l.b16 %v337
    %v350 = vpack.c.b16 %v347, %v346
    %v351 = vpack.c.b16 %v349, %v348
    %v355 = vsel %vm224, %v333, 0
    %357 = vmatpush.bf16.msra.mxu0 0
    %358 = vmatpush.bf16.msra.mxu0 0
    %359 = vmatpush.bf16.msra.mxu0 0
    %360 = vmatpush.bf16.msra.mxu0 0
    %361 = vmatpush.bf16.msra.mxu0 0
    %362 = vmatpush.bf16.msra.mxu0 0
    %363 = vmatpush.bf16.msra.mxu0 %v351
    %364 = vmatpush.bf16.msra.mxu0 %v350
    %365 = vmatmul.bf16.gmra.mxu0 %v355
    %v366 = vpop.f32.mrf.mxu0
    %v367 = vadd.f32 %v340, %v366
    %v368 = vpop.f32.mrf.mxu0
    %369 = vdwg.mxu0
    %v370 = vmax.f32 %v367, 0.0
    %v371 = vpack.c.bf16 %v370, %v370
    %v372 = vld [vmem:[#allocation14] sm:$0xf]
    %v373 = vld [vmem:[#allocation14 + $0x4] sm:$0xf]
    %v374 = vld [vmem:[#allocation14 + $0x8] sm:$0xf]
    %v375 = vld [vmem:[#allocation14 + $0xc] sm:$0xf]
    %v376 = vld [vmem:[%s15] sm:$0x1]
    %v378 = vperm.slane %v376, 0
    %v384 = vunpack.c.l.b16 %v372
    %v385 = vunpack.c.l.b16 %v373
    %v386 = vunpack.c.l.b16 %v374
    %v387 = vunpack.c.l.b16 %v375
    %v388 = vpack.c.b16 %v385, %v384
    %v389 = vpack.c.b16 %v387, %v386
    %v393 = vsel %vm224, %v371, 0
    %395 = vmatpush.bf16.msra.mxu0 0
    %396 = vmatpush.bf16.msra.mxu0 0
    %397 = vmatpush.bf16.msra.mxu0 0
    %398 = vmatpush.bf16.msra.mxu0 0
    %399 = vmatpush.bf16.msra.mxu0 0
    %400 = vmatpush.bf16.msra.mxu0 0
    %401 = vmatpush.bf16.msra.mxu0 %v389
    %402 = vmatpush.bf16.msra.mxu0 %v388
    %403 = vmatmul.bf16.gmra.mxu0 %v393
    %v404 = vpop.f32.mrf.mxu0
    %v405 = vadd.f32 %v378, %v404
    %v406 = vpop.f32.mrf.mxu0
    %407 = vdwg.mxu0
    %v408 = vtanh.pop %v405
    %409 = vst [vmem:[#allocation15] sm:$0xff] %v408
    %s410 = sld [smem:[#allocation2]]
    %v411 = vstv %s410
    %412 = vst [vmem:[#allocation16] sm:$0xff] %v411
    // Predicated region
    $region94: #{tpu_custom_call.1} parent=1 // pred_check
      _
    $region95: #{tpu_custom_call.1} parent=1 // pred_check_branch
      %414 = sbr.rel (0) target = $region97
    $region96: #{tpu_custom_call.1} parent=1 // pred_region
      %416 = vsyncadd [#allocation5], 0
      %s418 = sshll.u32 [#allocation15], 4
      %s419 = int_to_ptr.vmem [resolvable:$true] %s418
      %s420 = sshll.u32 %s16, 4
      %s421 = int_to_ptr.hbm [resolvable:$true] %s420
      %423 = dma.vmem_to_hbm [thread:$0]  %s419, 128, %s421, [#allocation5]
    $region97: #{tpu_custom_call.1} parent=1 // pred_fallthru
      _
    // Predicated region
    $region98: #{tpu_custom_call.1} parent=1 // pred_check
      _
    $region99: #{tpu_custom_call.1} parent=1 // pred_check_branch
      %425 = sbr.rel (0) target = $region101
    $region100: #{tpu_custom_call.1} parent=1 // pred_region
      %427 = vsyncadd [#allocation17], 0
      %s429 = sshll.u32 [#allocation16], 4
      %s430 = int_to_ptr.vmem [resolvable:$true] %s429
      %s431 = sshll.u32 %s17, 4
      %s432 = int_to_ptr.hbm [resolvable:$true] %s431
      %434 = dma.vmem_to_hbm [thread:$0]  %s430, 128, %s432, [#allocation17]
    $region101: #{tpu_custom_call.1} parent=1 // pred_fallthru
      _
    // Predicated region
    $region102: #{tpu_custom_call.1} parent=1 // pred_check
      _
    $region103: #{tpu_custom_call.1} parent=1 // pred_check_branch
      %436 = sbr.rel (0) target = $region105
    $region104: #{tpu_custom_call.1} parent=1 // pred_region
      %438 = dma.done [#allocation5], 128
    $region105: #{tpu_custom_call.1} parent=1 // pred_fallthru
      _
    // Predicated region
    $region106: #{tpu_custom_call.1} parent=1 // pred_check
      _
    $region107: #{tpu_custom_call.1} parent=1 // pred_check_branch
      %440 = sbr.rel (0) target = $region109
    $region108: #{tpu_custom_call.1} parent=1 // pred_region
      %442 = dma.done [#allocation17], 128
    $region109: #{tpu_custom_call.1} parent=1 // pred_fallthru
      _
    %443 = vsyncpa [#allocation4], 1
    %444 = vsyncpa [#allocation7], 1
    %445 = vsyncpa [#allocation10], 1
    %446 = vsyncpa [#allocation13], 1
    %447 = vsyncpa [#allocation5], 1
    %448 = vsyncpa [#allocation17], 1

</llo_original>
